<compile_context>
chip_gen: v7x
topology: tpu7x:2x2x1
jax: 0.10.0
libtpu: 0.0.40
codegen_flags: <defaults>
</compile_context>

<pallas_src>
import jax
import jax.numpy as jnp
from jax.experimental import pallas as pl
from jax.experimental.pallas import tpu as pltpu


def _myloss_kernel(lam_ref, pred_ref, rate_ref, w_ref, out_ref):
    # Data term on 2-D (1, B) refs: plain VPU subtract + square, one reduce.
    diff = pred_ref[...].astype(jnp.float32) - rate_ref[...].astype(jnp.float32)
    data_loss = 0.5 * jnp.sum(diff * diff)

    # Regularization: single fused square-accumulate over the lane-dense packed
    # slab + one cross-lane reduce (zero padding does not change the sum).
    w = w_ref[...].astype(jnp.float32)
    reg_loss = 0.5 * jnp.sum(w * w)

    out_ref[0, 0] = data_loss + lam_ref[0] * reg_loss


@jax.jit
def my_loss(weights, prediction, rating, norm_lambda):
    """weights: (w_user_review, w_user_id, w_item_review, w_item_id) 2D arrays.
    prediction / rating: (B, 1). Returns a scalar f32 loss."""
    # Pack all weight matrices into one lane-dense (R, 128) slab, R % 8 == 0.
    wdt = jnp.result_type(*(w.dtype for w in weights))
    flat = jnp.concatenate([w.reshape(-1).astype(wdt) for w in weights])
    pad = (-flat.shape[0]) % (8 * 128)
    if pad:
        flat = jnp.pad(flat, (0, pad))
    slab = flat.reshape(-1, 128)

    # Contiguous (B,1)->(1,B) reshapes are free; keep the subtract in-kernel.
    pred = prediction.reshape(1, -1).astype(jnp.float32)
    rate = rating.reshape(1, -1).astype(jnp.float32)
    lam = jnp.asarray([norm_lambda], jnp.float32)

    smem = pltpu.MemorySpace.SMEM
    vmem = pltpu.MemorySpace.VMEM
    out = pl.pallas_call(
        _myloss_kernel,
        out_shape=jax.ShapeDtypeStruct((1, 1), jnp.float32),
        in_specs=[
            pl.BlockSpec(memory_space=smem),   # norm_lambda (1,)
            pl.BlockSpec(memory_space=vmem),   # prediction (1, B)
            pl.BlockSpec(memory_space=vmem),   # rating     (1, B)
            pl.BlockSpec(memory_space=vmem),   # packed weight slab (R, 128)
        ],
        out_specs=pl.BlockSpec(memory_space=smem),
    )(lam, pred, rate, slab)
    return out[0, 0]


if __name__ == "__main__":
    key = jax.random.PRNGKey(0)
    k1, k2, k3, k4, k5, k6 = jax.random.split(key, 6)

    # Deterministic synthetic "model" weights (attention-layer Linear weights).
    att_dim, hidden, id_dim = 32, 32, 16
    w_user_review = jax.random.normal(k1, (att_dim, hidden), jnp.float32) * 0.1
    w_user_id     = jax.random.normal(k2, (att_dim, id_dim), jnp.float32) * 0.1
    w_item_review = jax.random.normal(k3, (att_dim, hidden), jnp.float32) * 0.1
    w_item_id     = jax.random.normal(k4, (att_dim, id_dim), jnp.float32) * 0.1
    weights = (w_user_review, w_user_id, w_item_review, w_item_id)

    batch = 8
    prediction = jax.random.normal(k5, (batch, 1), jnp.float32) * 2.0 + 3.0
    rating     = jax.random.randint(k6, (batch, 1), 1, 6).astype(jnp.float32)
    norm_lambda = 0.001

    loss = my_loss(weights, prediction, rating, norm_lambda)
    loss = jax.block_until_ready(loss)

    # Pure-JAX reference check.
    def l2(x):
        return 0.5 * jnp.sum(jnp.square(x))

    ref = l2(prediction - rating) + norm_lambda * sum(l2(w) for w in weights)
    assert jnp.allclose(loss, ref, rtol=1e-5, atol=1e-5), (loss, ref)

    print("KERNEL_OK")
</pallas_src>

<mosaic_0001>
module attributes {stable_mosaic.version = 11 : i64} {
  func.func @_myloss_kernel(%arg0: memref<1xf32, #tpu.memory_space<smem>>, %arg1: memref<1x8xf32, #tpu.memory_space<vmem>>, %arg2: memref<1x8xf32, #tpu.memory_space<vmem>>, %arg3: memref<24x128xf32, #tpu.memory_space<vmem>>, %arg4: memref<1x1xf32, #tpu.memory_space<smem>>) attributes {dimension_semantics = [], scalar_prefetch = 0 : i64, scratch_operands = 0 : i64, tpu.core_type = #tpu.core_type<tc>} {
    %c0 = arith.constant 0 : index
    %c0_0 = arith.constant 0 : index
    %0 = vector.load %arg1[%c0, %c0_0] : memref<1x8xf32, #tpu.memory_space<vmem>>, vector<1x8xf32>
    %c0_1 = arith.constant 0 : index
    %c0_2 = arith.constant 0 : index
    %1 = vector.load %arg2[%c0_1, %c0_2] : memref<1x8xf32, #tpu.memory_space<vmem>>, vector<1x8xf32>
    %2 = arith.subf %0, %1 : vector<1x8xf32>
    %3 = arith.mulf %2, %2 : vector<1x8xf32>
    %4 = vector.shape_cast %3 : vector<1x8xf32> to vector<1x1x8xf32>
    %cst = arith.constant dense<0.000000e+00> : vector<1xf32>
    %5 = vector.multi_reduction <add>, %4, %cst [1, 2] : vector<1x1x8xf32> to vector<1xf32>
    %6 = vector.shape_cast %5 : vector<1xf32> to vector<1x1x1xf32>
    %7 = vector.extract %6[0, 0, 0] : f32 from vector<1x1x1xf32>
    %cst_3 = arith.constant 5.000000e-01 : f32
    %8 = arith.mulf %cst_3, %7 : f32
    %c0_4 = arith.constant 0 : index
    %c0_5 = arith.constant 0 : index
    %9 = vector.load %arg3[%c0_4, %c0_5] : memref<24x128xf32, #tpu.memory_space<vmem>>, vector<24x128xf32>
    %10 = arith.mulf %9, %9 : vector<24x128xf32>
    %11 = vector.shape_cast %10 : vector<24x128xf32> to vector<1x24x128xf32>
    %cst_6 = arith.constant dense<0.000000e+00> : vector<1xf32>
    %12 = vector.multi_reduction <add>, %11, %cst_6 [1, 2] : vector<1x24x128xf32> to vector<1xf32>
    %13 = vector.shape_cast %12 : vector<1xf32> to vector<1x1x1xf32>
    %14 = vector.extract %13[0, 0, 0] : f32 from vector<1x1x1xf32>
    %cst_7 = arith.constant 5.000000e-01 : f32
    %15 = arith.mulf %cst_7, %14 : f32
    %c0_8 = arith.constant 0 : index
    %16 = memref.load %arg0[%c0_8] : memref<1xf32, #tpu.memory_space<smem>>
    %17 = arith.mulf %16, %15 : f32
    %18 = arith.addf %8, %17 : f32
    %c0_9 = arith.constant 0 : index
    %c0_10 = arith.constant 0 : index
    %19 = memref.load %arg4[%c0_9, %c0_10] : memref<1x1xf32, #tpu.memory_space<smem>>
    memref.store %18, %arg4[%c0_9, %c0_10] : memref<1x1xf32, #tpu.memory_space<smem>>
    return
  }
}

</mosaic_0001>

<llo_original>
// kernel: my_loss.1
$region0: #{my_loss.1}
  #allocation0 [shape = 'u32[]', space=smem, size = 0x4, offset = 0x4, fixed_abs, tag = 'smem constant byte address 0x4 - core index']
  #allocation1 [shape = 'u32[144,128]{1,0:T(1,128)}', space=vmem, size = 0x12000, scoped, tag = 'internal scratch']
  #allocation2 [shape = 'f32[1]{0:T(128)S(6)}', space=smem, size = 0x200, scoped, tag = 'scoped memory for my_loss.1']
  %s0 = inlined_call_operand.<no memory space> [shape: f32[1], index: 0, kind: input, shape index: {}]
  %s1 = inlined_call_operand.vmem [shape: f32[1,8], index: 1, kind: input, shape index: {}]
  %s2 = inlined_call_operand.vmem [shape: f32[1,8], index: 2, kind: input, shape index: {}]
  %s3 = inlined_call_operand.vmem [shape: f32[24,128], index: 3, kind: input, shape index: {}]
  %s4 = inlined_call_operand.hbm [shape: f32[1,1], index: 4, kind: output, shape index: {}]
  %s5 = sld [smem:[#allocation0]]
  $region26: #{my_loss.1} parent=0
    _
  %s7 = ssub.s32 1, %s5
  %s8 = scalar_select 0, %s7, %s5
  %9 = sst [smem:[#allocation2]] %s0
  $region1: #{my_loss.1} parent=0
    #allocation3 [shape = 'u8[512]{0}', space=smem, size = 0x200, scoped, tag = 'output window, operand 0, single buffered']
    #allocation4 [shape = 's32[1]{0}', space=sflag, size = 0x4, scoped, tag = 'scoped memory for my_loss.1']
    %10 = vsyncpa [#allocation4], 0
    // Predicated region
    $region2: #{my_loss.1} parent=1 // pred_check
      _
    $region3: #{my_loss.1} parent=1 // pred_check_branch
      %12 = sbr.rel (0) target = $region5
    $region4: #{my_loss.1} parent=1 // pred_region
      _
    $region5: #{my_loss.1} parent=1 // pred_fallthru
      _
    // Predicated region
    $region6: #{my_loss.1} parent=1 // pred_check
      _
    $region7: #{my_loss.1} parent=1 // pred_check_branch
      %14 = sbr.rel (0) target = $region9
    $region8: #{my_loss.1} parent=1 // pred_region
      _
    $region9: #{my_loss.1} parent=1 // pred_fallthru
      _
    // Predicated region
    $region10: #{my_loss.1} parent=1 // pred_check
      _
    $region11: #{my_loss.1} parent=1 // pred_check_branch
      %16 = sbr.rel (0) target = $region13
    $region12: #{my_loss.1} parent=1 // pred_region
      _
    $region13: #{my_loss.1} parent=1 // pred_fallthru
      _
    // Predicated region
    $region14: #{my_loss.1} parent=1 // pred_check
      _
    $region15: #{my_loss.1} parent=1 // pred_check_branch
      %18 = sbr.rel (0) target = $region17
    $region16: #{my_loss.1} parent=1 // pred_region
      _
    $region17: #{my_loss.1} parent=1 // pred_fallthru
      _
    %v19 = vld [vmem:[%s1] sm:$0x1]
    %v20 = vld [vmem:[%s2] sm:$0x1]
    %v21 = vsub.f32 %v19, %v20
    %v22 = vmul.f32 %v21, %v21
    %vm23 = vcmask 57344
    %v24 = vsel %vm23, %v22, 0.0
    %25 = vadd.xlane.f32.xlu0 %v24
    %v26 = vpop.xlane.xlu0 %25
    %v27 = vrot.slane %v26, 4
    %v28 = vadd.f32 %v26, %v27
    %v29 = vrot.slane %v28, 2
    %v30 = vadd.f32 %v28, %v29
    %v31 = vrot.slane %v30, 1
    %v32 = vadd.f32 %v30, %v31
    %s33 = vtos %v32
    %s34 = smul.f32 %s33, 0.5
    %v35 = vld [vmem:[%s3] sm:$0xff]
    %v36 = vld [vmem:[%s3 + $0x8] sm:$0xff]
    %v37 = vld [vmem:[%s3 + $0x10] sm:$0xff]
    %v38 = vmul.f32 %v35, %v35
    %v39 = vmul.f32 %v36, %v36
    %v40 = vmul.f32 %v37, %v37
    %v41 = vadd.f32 %v38, %v39
    %v42 = vadd.f32 %v41, %v40
    %43 = vadd.xlane.f32.xlu0 %v42
    %v44 = vpop.xlane.xlu0 %43
    %v45 = vrot.slane %v44, 4
    %v46 = vadd.f32 %v44, %v45
    %v47 = vrot.slane %v46, 2
    %v48 = vadd.f32 %v46, %v47
    %v49 = vrot.slane %v48, 1
    %v50 = vadd.f32 %v48, %v49
    %s51 = vtos %v50
    %s52 = smul.f32 %s51, 0.5
    %s53 = sld [smem:[#allocation2]]
    %s54 = smul.f32 %s53, %s52
    %s55 = sadd.f32 %s34, %s54
    %s56 = scalar_lea.smem [#allocation3], 0
    %57 = sst [smem:[%s56]] %s55
    // Predicated region
    $region18: #{my_loss.1} parent=1 // pred_check
      _
    $region19: #{my_loss.1} parent=1 // pred_check_branch
      %59 = sbr.rel (0) target = $region21
    $region20: #{my_loss.1} parent=1 // pred_region
      %s61 = ssub.s32 16, 16
      %62 = vsyncadd [#allocation4], %s61
      %65 = dma.smem_to_hbm [#allocation3], 16, %s4, [#allocation4]
    $region21: #{my_loss.1} parent=1 // pred_fallthru
      _
    // Predicated region
    $region22: #{my_loss.1} parent=1 // pred_check
      _
    $region23: #{my_loss.1} parent=1 // pred_check_branch
      %67 = sbr.rel (0) target = $region25
    $region24: #{my_loss.1} parent=1 // pred_region
      %68 = dma.done [#allocation4], 16
    $region25: #{my_loss.1} parent=1 // pred_fallthru
      _
    %69 = sfence
    %70 = vsyncpa [#allocation4], 1

</llo_original>
